<compile_context>
chip_gen: v6e
topology: v6e:2x2x1
jax: 0.10.0
libtpu: 0.0.40
codegen_flags: <defaults>
</compile_context>

<pallas_src>
import functools

import jax
import jax.numpy as jnp
from jax.experimental import pallas as pl
from jax.experimental.pallas import tpu as pltpu


def _round_up(x, m):
    return ((x + m - 1) // m) * m


def _mlp_kernel(*refs, num_layers):
    """Fused MLP forward, fully resident in VMEM.

    refs = (x_ref, w0_ref, b0_ref, w1_ref, b1_ref, ..., o_ref)
    Computes h = relu(h @ W_i + b_i) for each layer. Matmul inputs are bf16,
    accumulation is f32 (preferred_element_type), output is stored in f32.
    """
    x_ref = refs[0]
    o_ref = refs[-1]
    param_refs = refs[1:-1]

    h = x_ref[...]  # bf16 activations
    for i in range(num_layers):
        w = param_refs[2 * i][...]          # bf16 [in, out]
        b = param_refs[2 * i + 1][...]      # f32  [1, out]
        acc = jnp.dot(h, w, preferred_element_type=jnp.float32) + b
        # Dropout: identity in eval mode. Activation: ReLU.
        acc = jnp.maximum(acc, 0.0)
        # Keep f32 for the final store; feed bf16 into the next MXU matmul.
        h = acc.astype(jnp.bfloat16) if i + 1 < num_layers else acc
    o_ref[...] = h.astype(o_ref.dtype)


def _choose_batch_tile(batch, layer_dims, *, max_tile=512,
                       vmem_budget_bytes=24 * 1024 * 1024):
    """Pick a batch tile: as large as possible (amortize per-step pipeline
    overhead), but keep >=2 grid steps for dual-TC chips (v7x) and stay well
    under the scoped-VMEM budget (v7x: 64 MiB physical / 32 MiB default)."""
    tile = min(max_tile, max(8, _round_up(pl.cdiv(batch, 2), 8)))

    def vmem_bytes(t):
        in_dim, out_dim = layer_dims[0], layer_dims[-1]
        n = 2 * t * in_dim * 2            # x block (bf16), double-buffered
        n += 2 * t * out_dim * 4          # out block (f32), double-buffered
        for d_in, d_out in zip(layer_dims[:-1], layer_dims[1:]):
            n += 2 * (d_in * d_out * 2 + d_out * 4)   # W (bf16) + b (f32), 2 bufs
            n += t * d_out * 4            # intermediate activation slab
        return n

    while tile > 8 and vmem_bytes(tile) > vmem_budget_bytes:
        tile = max(8, _round_up(tile // 2, 8))
    return tile


def game_encoder_forward(x, weights, biases, *, batch_tile=None):
    """Run the fused GameEncoder MLP.

    x:       [B, game_feature_count] float array
    weights: list of [in_i, out_i] float arrays
    biases:  list of [1, out_i]    float arrays
    Returns  [B, out_last] float32.
    """
    num_layers = len(weights)
    B, in_dim = x.shape
    out_dim = weights[-1].shape[1]

    # Lane-dense output: pad the last layer to a multiple of 128 output
    # columns (zero weights / zero bias -> relu gives zeros; sliced off below).
    out_pad = _round_up(out_dim, 128)
    w_list = [w.astype(jnp.bfloat16) for w in weights]
    b_list = [b.astype(jnp.float32) for b in biases]
    if out_pad != out_dim:
        w_list[-1] = jnp.pad(w_list[-1], ((0, 0), (0, out_pad - out_dim)))
        b_list[-1] = jnp.pad(b_list[-1], ((0, 0), (0, out_pad - out_dim)))

    layer_dims = [in_dim] + [w.shape[1] for w in w_list]

    if batch_tile is None:
        batch_tile = _choose_batch_tile(B, layer_dims)

    # Pad batch to a tile multiple (handles arbitrary B with a large tile).
    B_padded = _round_up(max(B, batch_tile), batch_tile)
    x_in = x.astype(jnp.bfloat16)
    if B_padded != B:
        x_in = jnp.pad(x_in, ((0, B_padded - B), (0, 0)))

    grid = (B_padded // batch_tile,)

    in_specs = [pl.BlockSpec((batch_tile, in_dim), lambda m: (m, 0))]
    for w, b in zip(w_list, b_list):
        # Parameters are tiny and grid-invariant: replicate the full block to
        # every grid step (block == full array satisfies the (8,128) rule).
        in_specs.append(pl.BlockSpec(w.shape, lambda m: (0, 0)))
        in_specs.append(pl.BlockSpec(b.shape, lambda m: (0, 0)))

    out_specs = pl.BlockSpec((batch_tile, out_pad), lambda m: (m, 0))

    kernel = functools.partial(_mlp_kernel, num_layers=num_layers)

    # Advisory cost estimate for XLA scheduling around this small custom call.
    flops = 2 * B_padded * sum(d_in * d_out
                               for d_in, d_out in zip(layer_dims[:-1], layer_dims[1:]))
    bytes_accessed = (B_padded * in_dim * 2 + B_padded * out_pad * 4 +
                      sum(int(w.size) * 2 for w in w_list) +
                      sum(int(b.size) * 4 for b in b_list))
    cost = pl.CostEstimate(flops=int(flops), transcendentals=0,
                           bytes_accessed=int(bytes_accessed))

    out = pl.pallas_call(
        kernel,
        out_shape=jax.ShapeDtypeStruct((B_padded, out_pad), jnp.float32),
        grid_spec=pltpu.PrefetchScalarGridSpec(
            num_scalar_prefetch=0,
            grid=grid,
            in_specs=in_specs,
            out_specs=out_specs,
        ),
        compiler_params=pltpu.CompilerParams(
            dimension_semantics=("parallel",),
        ),
        cost_estimate=cost,
    )(x_in, *[p for wb in zip(w_list, b_list) for p in wb])

    return out[:B, :out_dim]


def init_params(key, game_feature_count, mlp_layer_sizes):
    """Deterministic parameter init mimicking nn.Linear's uniform(-1/sqrt(fan_in), ...)."""
    weights, biases = [], []
    in_dim = game_feature_count
    for out_dim in mlp_layer_sizes:
        key, kw, kb = jax.random.split(key, 3)
        bound = 1.0 / jnp.sqrt(jnp.float32(in_dim))
        # stored as [in, out] (transpose of PyTorch [out, in])
        w = jax.random.uniform(kw, (in_dim, out_dim), jnp.float32, -bound, bound)
        b = jax.random.uniform(kb, (1, out_dim), jnp.float32, -bound, bound)
        weights.append(w)
        biases.append(b)
        in_dim = out_dim
    return weights, biases


def reference_forward_bf16(x, weights, biases):
    """Pure-JAX reference mirroring the kernel's bf16-in / f32-accumulate path."""
    h = x.astype(jnp.bfloat16)
    n = len(weights)
    for i, (w, b) in enumerate(zip(weights, biases)):
        a = jnp.dot(h, w.astype(jnp.bfloat16),
                    preferred_element_type=jnp.float32) + b.astype(jnp.float32)
        a = jnp.maximum(a, 0.0)
        h = a.astype(jnp.bfloat16) if i + 1 < n else a
    return h


def reference_forward_f32(x, weights, biases):
    h = x
    for w, b in zip(weights, biases):
        h = jnp.maximum(h @ w + b, 0.0)  # Linear -> Dropout(eval=id) -> ReLU
    return h


if __name__ == "__main__":
    # Small config consistent with the module's constructor:
    #   GameEncoder(game_feature_count=32, mlp_layer_sizes=[64, 32],
    #               dropout_rates=[0.1, 0.1], activation_str='ReLU')
    game_feature_count = 32
    mlp_layer_sizes = [64, 32]
    batch = 20  # deliberately not a tile multiple -> exercises the padding path

    key = jax.random.PRNGKey(0)
    key, kx = jax.random.split(key)
    x = jax.random.normal(kx, (batch, game_feature_count), jnp.float32)

    weights, biases = init_params(key, game_feature_count, mlp_layer_sizes)

    out = game_encoder_forward(x, weights, biases)
    out = jax.block_until_ready(out)

    ref_bf16 = reference_forward_bf16(x, weights, biases)
    ref_f32 = reference_forward_f32(x, weights, biases)

    assert out.shape == (batch, mlp_layer_sizes[-1])
    assert jnp.allclose(out, ref_bf16, atol=1e-2, rtol=1e-2), "mismatch vs bf16 reference"
    assert jnp.allclose(out, ref_f32, atol=5e-2, rtol=5e-2), "mismatch vs f32 reference"

    print("KERNEL_OK")
</pallas_src>

<mosaic_0001>
module attributes {stable_mosaic.version = 11 : i64} {
  func.func @_mlp_kernel(%arg0: i32, %arg1: memref<16x32xbf16, #tpu.memory_space<vmem>>, %arg2: memref<32x64xbf16, #tpu.memory_space<vmem>>, %arg3: memref<1x64xf32, #tpu.memory_space<vmem>>, %arg4: memref<64x128xbf16, #tpu.memory_space<vmem>>, %arg5: memref<1x128xf32, #tpu.memory_space<vmem>>, %arg6: memref<16x128xf32, #tpu.memory_space<vmem>>) attributes {dimension_semantics = [#tpu.dimension_semantics<parallel>], iteration_bounds = array<i64: 2>, scalar_prefetch = 0 : i64, scratch_operands = 0 : i64, tpu.core_type = #tpu.core_type<tc>, window_params = [{transform_indices = @transform_0, window_bounds = array<i64: 16, 32>}, {pipeline_mode = #tpu.pipeline_mode<synchronous>, transform_indices = @transform_1, window_bounds = array<i64: 32, 64>}, {pipeline_mode = #tpu.pipeline_mode<synchronous>, transform_indices = @transform_2, window_bounds = array<i64: 1, 64>}, {pipeline_mode = #tpu.pipeline_mode<synchronous>, transform_indices = @transform_3, window_bounds = array<i64: 64, 128>}, {pipeline_mode = #tpu.pipeline_mode<synchronous>, transform_indices = @transform_4, window_bounds = array<i64: 1, 128>}, {transform_indices = @transform_5, window_bounds = array<i64: 16, 128>}]} {
    %c0 = arith.constant 0 : index
    %c0_0 = arith.constant 0 : index
    %0 = vector.load %arg1[%c0, %c0_0] : memref<16x32xbf16, #tpu.memory_space<vmem>>, vector<16x32xbf16>
    %c0_1 = arith.constant 0 : index
    %c0_2 = arith.constant 0 : index
    %1 = vector.load %arg2[%c0_1, %c0_2] : memref<32x64xbf16, #tpu.memory_space<vmem>>, vector<32x64xbf16>
    %c0_3 = arith.constant 0 : index
    %c0_4 = arith.constant 0 : index
    %2 = vector.load %arg3[%c0_3, %c0_4] : memref<1x64xf32, #tpu.memory_space<vmem>>, vector<1x64xf32>
    %cst = arith.constant dense<0.000000e+00> : vector<16x64xf32>
    %3 = tpu.matmul %0, %1, %cst {dimension_numbers = #tpu.dot_dimension_numbers<[1], [0], [0], [1], [0, 0, 1, 1], [], []>} : vector<16x32xbf16>, vector<32x64xbf16>, vector<16x64xf32> -> vector<16x64xf32>
    %4 = vector.broadcast %2 : vector<1x64xf32> to vector<16x64xf32>
    %5 = arith.addf %3, %4 : vector<16x64xf32>
    %cst_5 = arith.constant 0.000000e+00 : f32
    %6 = vector.broadcast %cst_5 : f32 to vector<16x64xf32>
    %7 = arith.maximumf %5, %6 : vector<16x64xf32>
    %8 = arith.truncf %7 : vector<16x64xf32> to vector<16x64xbf16>
    %c0_6 = arith.constant 0 : index
    %c0_7 = arith.constant 0 : index
    %9 = vector.load %arg4[%c0_6, %c0_7] : memref<64x128xbf16, #tpu.memory_space<vmem>>, vector<64x128xbf16>
    %c0_8 = arith.constant 0 : index
    %c0_9 = arith.constant 0 : index
    %10 = vector.load %arg5[%c0_8, %c0_9] : memref<1x128xf32, #tpu.memory_space<vmem>>, vector<1x128xf32>
    %cst_10 = arith.constant dense<0.000000e+00> : vector<16x128xf32>
    %11 = tpu.matmul %8, %9, %cst_10 {dimension_numbers = #tpu.dot_dimension_numbers<[1], [0], [0], [1], [0, 0, 1, 1], [], []>} : vector<16x64xbf16>, vector<64x128xbf16>, vector<16x128xf32> -> vector<16x128xf32>
    %12 = vector.broadcast %10 : vector<1x128xf32> to vector<16x128xf32>
    %13 = arith.addf %11, %12 : vector<16x128xf32>
    %cst_11 = arith.constant 0.000000e+00 : f32
    %14 = vector.broadcast %cst_11 : f32 to vector<16x128xf32>
    %15 = arith.maximumf %13, %14 : vector<16x128xf32>
    %c0_12 = arith.constant 0 : index
    %c0_13 = arith.constant 0 : index
    %16 = vector.load %arg6[%c0_12, %c0_13] : memref<16x128xf32, #tpu.memory_space<vmem>>, vector<16x128xf32>
    tpu.vector_store %arg6[%c0_12, %c0_13], %15 {strides = array<i32>} : memref<16x128xf32, #tpu.memory_space<vmem>>, vector<16x128xf32>,
    return
  }
  func.func @transform_0(%arg0: i32) -> (i32, i32) {
    %c0_i32 = arith.constant 0 : i32
    %c0_i32_0 = arith.constant 0 : i32
    return %arg0, %c0_i32 : i32, i32
  }
  func.func @transform_1(%arg0: i32) -> (i32, i32) {
    %c0_i32 = arith.constant 0 : i32
    %c0_i32_0 = arith.constant 0 : i32
    %c0_i32_1 = arith.constant 0 : i32
    return %c0_i32, %c0_i32_0 : i32, i32
  }
  func.func @transform_2(%arg0: i32) -> (i32, i32) {
    %c0_i32 = arith.constant 0 : i32
    %c0_i32_0 = arith.constant 0 : i32
    %c0_i32_1 = arith.constant 0 : i32
    return %c0_i32, %c0_i32_0 : i32, i32
  }
  func.func @transform_3(%arg0: i32) -> (i32, i32) {
    %c0_i32 = arith.constant 0 : i32
    %c0_i32_0 = arith.constant 0 : i32
    %c0_i32_1 = arith.constant 0 : i32
    return %c0_i32, %c0_i32_0 : i32, i32
  }
  func.func @transform_4(%arg0: i32) -> (i32, i32) {
    %c0_i32 = arith.constant 0 : i32
    %c0_i32_0 = arith.constant 0 : i32
    %c0_i32_1 = arith.constant 0 : i32
    return %c0_i32, %c0_i32_0 : i32, i32
  }
  func.func @transform_5(%arg0: i32) -> (i32, i32) {
    %c0_i32 = arith.constant 0 : i32
    %c0_i32_0 = arith.constant 0 : i32
    return %arg0, %c0_i32 : i32, i32
  }
}

</mosaic_0001>

<llo_original>
// kernel: tpu_custom_call.1
$region0: #{tpu_custom_call.1}
  #allocation0 [shape = 'u32[]', space=smem, size = 0x4, offset = 0x4, fixed_abs, tag = 'smem constant byte address 0x4 - core index']
  #allocation1 [shape = 'u32[144,128]{1,0:T(1,128)}', space=vmem, size = 0x12000, scoped, tag = 'internal scratch']
  %s0 = inlined_call_operand.hbm [shape: bf16[32,32], index: 0, kind: input, shape index: {}]
  %s1 = inlined_call_operand.hbm [shape: bf16[32,64], index: 1, kind: input, shape index: {}]
  %s2 = inlined_call_operand.vmem [shape: f32[1,64], index: 2, kind: input, shape index: {}]
  %s3 = inlined_call_operand.hbm [shape: bf16[64,128], index: 3, kind: input, shape index: {}]
  %s4 = inlined_call_operand.vmem [shape: f32[1,128], index: 4, kind: input, shape index: {}]
  %s5 = inlined_call_operand.hbm [shape: f32[32,128], index: 5, kind: output, shape index: {}]
  %s6 = sld [smem:[#allocation0]]
  $region65: #{tpu_custom_call.1} parent=0
    _
  %s8 = ssub.s32 1, %s6
  %s9 = scalar_select 0, %s8, %s6
  $region1: #{tpu_custom_call.1} parent=0
    #allocation2 [shape = 'u8[8192]{0}', space=vmem, size = 0x2000, scoped, tag = 'input window, operand 0']
    #allocation3 [shape = 's32[2]{0}', space=sflag, size = 0x8, scoped, tag = 'scoped memory for tpu_custom_call.1']
    #allocation4 [shape = 's32[2]{0}', space=sflag, size = 0x8, scoped, tag = 'scoped memory for tpu_custom_call.1']
    #allocation5 [shape = 'u8[8192]{0}', space=vmem, size = 0x2000, scoped, tag = 'input window, operand 1, single buffered']
    #allocation6 [shape = 's32[1]{0}', space=sflag, size = 0x4, scoped, tag = 'scoped memory for tpu_custom_call.1']
    #allocation7 [shape = 'u8[16384]{0}', space=vmem, size = 0x4000, scoped, tag = 'input window, operand 3, single buffered']
    #allocation8 [shape = 'u8[16384]{0}', space=vmem, size = 0x4000, scoped, tag = 'output window, operand 0']
    %10 = vsyncpa [#allocation3], 0
    %s11 = scalar_lea.sflag [#allocation3], 1
    %12 = vsyncpa %s11, 0
    %13 = vsyncpa [#allocation6], 0
    %14 = vsyncpa [#allocation4], 0
    %s15 = scalar_lea.sflag [#allocation4], 1
    %16 = vsyncpa %s15, 0
    loop: start=0, step=1, limit=4
    $region2: #{tpu_custom_call.1} parent=1 // loop_pre_header
      _
    $region3: #{tpu_custom_call.1} parent=1 // loop_header
      %s18 = sphi 0, %s22
      %p19 = scmp.ge.s32.totalorder %s18, 4
      %s28 = sphi 0, %s30
      %s31 = sphi 0, %s28
      %s32 = sphi 0, %s31
      %s48 = sphi 0, %s32
      %s52 = sphi 0, %s52
      %s54 = sphi 0, %s52
      %s55 = sphi 0, %s54
      %s69 = sphi 0, %s55
      %s73 = sphi 0, %s73
      %s75 = sphi 0, %s73
      %s76 = sphi 0, %s75
      %s90 = sphi 0, %s76
      %s94 = sphi 0, %s94
      %s96 = sphi 0, %s94
      %s97 = sphi 0, %s96
      %s111 = sphi 0, %s97
      %s115 = sphi 0, %s115
      %s117 = sphi 0, %s115
      %s118 = sphi 0, %s117
      %s132 = sphi 0, %s118
      %s138 = sphi 0, %s140
      %s141 = sphi 0, %s138
      %s142 = sphi 0, %s141
      %s158 = sphi 0, %s142
    $region4: #{tpu_custom_call.1} parent=1 // loop_header_branch
      %21 = sbr.rel (%p19) target = $region8
    $region5: #{tpu_custom_call.1} parent=1 // loop_body
      %s23 = ssub.s32 %s18, 1
      %s24 = ssub.s32 %s18, 2
      %s25 = sadd.s32 %s18, 1
      %s26 = ssub.s32 %s18, %s25
      %p27 = scmp.eq.s32.totalorder %s26, 0
      %s29 = sadd.s32 %s28, 1
      %s30 = scalar_select %p27, %s28, %s29
      %p33 = pneg %p27
      %p34 = scmp.eq.s32.totalorder %s18, 1
      %p35 = por %p33, %p34
      %p36 = scmp.ne.s32.totalorder %s28, %s31
      %p37 = scmp.eq.s32.totalorder %s18, 0
      %p38 = por %p36, %p37
      %p39 = scmp.ne.s32.totalorder %s28, %s31
      %p40 = scmp.eq.s32.totalorder %s23, 1
      %p41 = por %p39, %p40
      %p42 = scmp.ne.s32.totalorder %s31, %s32
      %p43 = scmp.eq.s32.totalorder %s23, 0
      %p44 = por %p42, %p43
      %p45 = scmp.ne.s32.totalorder %s31, %s32
      %p46 = scmp.eq.s32.totalorder %s24, 1
      %p47 = por %p45, %p46
      %p49 = scmp.ne.s32.totalorder %s32, %s48
      %p50 = scmp.eq.s32.totalorder %s24, 0
      %p51 = por %p49, %p50
      %s53 = sadd.s32 %s52, 1
      %p56 = scmp.eq.s32.totalorder %s18, 1
      %p57 = scmp.ne.s32.totalorder %s52, %s54
      %p58 = scmp.eq.s32.totalorder %s18, 0
      %p59 = por %p57, %p58
      %p60 = scmp.ne.s32.totalorder %s52, %s54
      %p61 = scmp.eq.s32.totalorder %s23, 1
      %p62 = por %p60, %p61
      %p63 = scmp.ne.s32.totalorder %s54, %s55
      %p64 = scmp.eq.s32.totalorder %s23, 0
      %p65 = por %p63, %p64
      %p66 = scmp.ne.s32.totalorder %s54, %s55
      %p67 = scmp.eq.s32.totalorder %s24, 1
      %p68 = por %p66, %p67
      %p70 = scmp.ne.s32.totalorder %s55, %s69
      %p71 = scmp.eq.s32.totalorder %s24, 0
      %p72 = por %p70, %p71
      %s74 = sadd.s32 %s73, 1
      %p77 = scmp.eq.s32.totalorder %s18, 1
      %p78 = scmp.ne.s32.totalorder %s73, %s75
      %p79 = scmp.eq.s32.totalorder %s18, 0
      %p80 = por %p78, %p79
      %p81 = scmp.ne.s32.totalorder %s73, %s75
      %p82 = scmp.eq.s32.totalorder %s23, 1
      %p83 = por %p81, %p82
      %p84 = scmp.ne.s32.totalorder %s75, %s76
      %p85 = scmp.eq.s32.totalorder %s23, 0
      %p86 = por %p84, %p85
      %p87 = scmp.ne.s32.totalorder %s75, %s76
      %p88 = scmp.eq.s32.totalorder %s24, 1
      %p89 = por %p87, %p88
      %p91 = scmp.ne.s32.totalorder %s76, %s90
      %p92 = scmp.eq.s32.totalorder %s24, 0
      %p93 = por %p91, %p92
      %s95 = sadd.s32 %s94, 1
      %p98 = scmp.eq.s32.totalorder %s18, 1
      %p99 = scmp.ne.s32.totalorder %s94, %s96
      %p100 = scmp.eq.s32.totalorder %s18, 0
      %p101 = por %p99, %p100
      %p102 = scmp.ne.s32.totalorder %s94, %s96
      %p103 = scmp.eq.s32.totalorder %s23, 1
      %p104 = por %p102, %p103
      %p105 = scmp.ne.s32.totalorder %s96, %s97
      %p106 = scmp.eq.s32.totalorder %s23, 0
      %p107 = por %p105, %p106
      %p108 = scmp.ne.s32.totalorder %s96, %s97
      %p109 = scmp.eq.s32.totalorder %s24, 1
      %p110 = por %p108, %p109
      %p112 = scmp.ne.s32.totalorder %s97, %s111
      %p113 = scmp.eq.s32.totalorder %s24, 0
      %p114 = por %p112, %p113
      %s116 = sadd.s32 %s115, 1
      %p119 = scmp.eq.s32.totalorder %s18, 1
      %p120 = scmp.ne.s32.totalorder %s115, %s117
      %p121 = scmp.eq.s32.totalorder %s18, 0
      %p122 = por %p120, %p121
      %p123 = scmp.ne.s32.totalorder %s115, %s117
      %p124 = scmp.eq.s32.totalorder %s23, 1
      %p125 = por %p123, %p124
      %p126 = scmp.ne.s32.totalorder %s117, %s118
      %p127 = scmp.eq.s32.totalorder %s23, 0
      %p128 = por %p126, %p127
      %p129 = scmp.ne.s32.totalorder %s117, %s118
      %p130 = scmp.eq.s32.totalorder %s24, 1
      %p131 = por %p129, %p130
      %p133 = scmp.ne.s32.totalorder %s118, %s132
      %p134 = scmp.eq.s32.totalorder %s24, 0
      %p135 = por %p133, %p134
      %s136 = ssub.s32 %s18, %s25
      %p137 = scmp.eq.s32.totalorder %s136, 0
      %s139 = sadd.s32 %s138, 1
      %s140 = scalar_select %p137, %s138, %s139
      %p143 = pneg %p137
      %p144 = scmp.eq.s32.totalorder %s18, 1
      %p145 = por %p143, %p144
      %p146 = scmp.ne.s32.totalorder %s138, %s141
      %p147 = scmp.eq.s32.totalorder %s18, 0
      %p148 = por %p146, %p147
      %p149 = scmp.ne.s32.totalorder %s138, %s141
      %p150 = scmp.eq.s32.totalorder %s23, 1
      %p151 = por %p149, %p150
      %p152 = scmp.ne.s32.totalorder %s141, %s142
      %p153 = scmp.eq.s32.totalorder %s23, 0
      %p154 = por %p152, %p153
      %p155 = scmp.ne.s32.totalorder %s141, %s142
      %p156 = scmp.eq.s32.totalorder %s24, 1
      %p157 = por %p155, %p156
      %p159 = scmp.ne.s32.totalorder %s142, %s158
      %p160 = scmp.eq.s32.totalorder %s24, 0
      %p161 = por %p159, %p160
      %p162 = scmp.le.s32.totalorder 1, %s18
      %p163 = scmp.lt.s32.totalorder %s18, 3
      %p164 = pnand %p162, %p163
      %p165 = pneg %p164
      // Predicated region
      $region9: #{tpu_custom_call.1} parent=5 // pred_check
        _
      $region10: #{tpu_custom_call.1} parent=5 // pred_check_branch
        %167 = sbr.rel (%p164) target = $region12
      $region11: #{tpu_custom_call.1} parent=5 // pred_region
        %s168 = ssub.s32 %s18, 1
        // Predicated region
        $region13: #{tpu_custom_call.1} parent=11 // pred_check
          %p169 = pneg %p65
        $region14: #{tpu_custom_call.1} parent=11 // pred_check_branch
          %171 = sbr.rel (%p169) target = $region16
        $region15: #{tpu_custom_call.1} parent=11 // pred_region
          %s173 = ssub.s32 256, 256
          %174 = vsyncadd [#allocation6], %s173
          %s175 = sshll.u32 [#allocation5], 4
          %s176 = int_to_ptr.vmem [resolvable:$true] %s175
          %181 = dma.hbm_to_vmem [thread:$0]  %s1, 256, %s176, [#allocation6], 64, 64, 4
        $region16: #{tpu_custom_call.1} parent=11 // pred_fallthru
          _
        // Predicated region
        $region17: #{tpu_custom_call.1} parent=11 // pred_check
          %p182 = pneg %p86
        $region18: #{tpu_custom_call.1} parent=11 // pred_check_branch
          %184 = sbr.rel (%p182) target = $region20
        $region19: #{tpu_custom_call.1} parent=11 // pred_region
          _
        $region20: #{tpu_custom_call.1} parent=11 // pred_fallthru
          _
        // Predicated region
        $region21: #{tpu_custom_call.1} parent=11 // pred_check
          %p185 = pneg %p107
        $region22: #{tpu_custom_call.1} parent=11 // pred_check_branch
          %187 = sbr.rel (%p185) target = $region24
        $region23: #{tpu_custom_call.1} parent=11 // pred_region
          %s189 = ssub.s32 512, 512
          %190 = vsyncadd [#allocation6], %s189
          %s191 = sshll.u32 [#allocation7], 4
          %s192 = int_to_ptr.vmem [resolvable:$true] %s191
          %197 = dma.hbm_to_vmem [thread:$0]  %s3, 512, %s192, [#allocation6], 64, 64, 4
        $region24: #{tpu_custom_call.1} parent=11 // pred_fallthru
          _
        // Predicated region
        $region25: #{tpu_custom_call.1} parent=11 // pred_check
          %p198 = pneg %p128
        $region26: #{tpu_custom_call.1} parent=11 // pred_check_branch
          %200 = sbr.rel (%p198) target = $region28
        $region27: #{tpu_custom_call.1} parent=11 // pred_region
          _
        $region28: #{tpu_custom_call.1} parent=11 // pred_fallthru
          _
      $region12: #{tpu_custom_call.1} parent=5 // pred_fallthru
        _
      %p201 = scmp.lt.s32.totalorder %s18, 2
      // Predicated region
      $region29: #{tpu_custom_call.1} parent=5 // pred_check
        %p202 = pneg %p201
      $region30: #{tpu_custom_call.1} parent=5 // pred_check_branch
        %204 = sbr.rel (%p202) target = $region32
      $region31: #{tpu_custom_call.1} parent=5 // pred_region
        // Predicated region
        $region33: #{tpu_custom_call.1} parent=31 // pred_check
          %p205 = pneg %p38
        $region34: #{tpu_custom_call.1} parent=31 // pred_check_branch
          %207 = sbr.rel (%p205) target = $region36
        $region35: #{tpu_custom_call.1} parent=31 // pred_region
          %s208 = sand.u32 %s28, 1
          %s209 = scalar_lea.sflag [#allocation3], %s208
          %s210 = sand.u32 %s28, 1
          %s211 = smul.addr %s210, 8
          %s212 = scalar_lea.vmem [#allocation2], %s211
          %s213 = smul.u32 2, %s18
          %s215 = ssub.s32 128, 128
          %216 = vsyncadd %s209, %s215
          %s217 = smul.addr %s213, 64
          %s218 = scalar_lea.hbm %s0, %s217
          %s219 = sshll.u32 %s212, 4
          %s220 = int_to_ptr.vmem [resolvable:$true] %s219
          %225 = dma.hbm_to_vmem [thread:$0]  %s218, 128, %s220, %s209, 64, 64, 4
        $region36: #{tpu_custom_call.1} parent=31 // pred_fallthru
          _
      $region32: #{tpu_custom_call.1} parent=5 // pred_fallthru
        _
      %p226 = scmp.le.s32.totalorder 1, %s18
      %p227 = scmp.lt.s32.totalorder %s18, 3
      %p228 = pnand %p226, %p227
      %p229 = pneg %p228
      // Predicated region
      $region37: #{tpu_custom_call.1} parent=5 // pred_check
        _
      $region38: #{tpu_custom_call.1} parent=5 // pred_check_branch
        %231 = sbr.rel (%p228) target = $region40
      $region39: #{tpu_custom_call.1} parent=5 // pred_region
        %s232 = ssub.s32 %s18, 1
        %s233 = sand.u32 %s31, 1
        %s234 = scalar_lea.sflag [#allocation3], %s233
        %s235 = sand.u32 %s31, 1
        %s236 = smul.addr %s235, 8
        %s237 = scalar_lea.vmem [#allocation2], %s236
        // Predicated region
        $region41: #{tpu_custom_call.1} parent=39 // pred_check
          %p238 = pneg %p44
        $region42: #{tpu_custom_call.1} parent=39 // pred_check_branch
          %240 = sbr.rel (%p238) target = $region44
        $region43: #{tpu_custom_call.1} parent=39 // pred_region
          %241 = dma.done %s234, 128
        $region44: #{tpu_custom_call.1} parent=39 // pred_fallthru
          _
        // Predicated region
        $region45: #{tpu_custom_call.1} parent=39 // pred_check
          %p242 = pneg %p65
        $region46: #{tpu_custom_call.1} parent=39 // pred_check_branch
          %244 = sbr.rel (%p242) target = $region48
        $region47: #{tpu_custom_call.1} parent=39 // pred_region
          %245 = dma.done [#allocation6], 256
        $region48: #{tpu_custom_call.1} parent=39 // pred_fallthru
          _
        // Predicated region
        $region49: #{tpu_custom_call.1} parent=39 // pred_check
          %p246 = pneg %p107
        $region50: #{tpu_custom_call.1} parent=39 // pred_check_branch
          %248 = sbr.rel (%p246) target = $region52
        $region51: #{tpu_custom_call.1} parent=39 // pred_region
          %249 = dma.done [#allocation6], 512
        $region52: #{tpu_custom_call.1} parent=39 // pred_fallthru
          _
        %s250 = sand.u32 %s31, 1
        %s251 = scalar_lea.sflag [#allocation3], %s250
        %s252 = sand.u32 %s31, 1
        %s253 = smul.addr %s252, 8
        %s254 = scalar_lea.vmem [#allocation2], %s253
        %p255 = pneg %p44
        %p256 = pneg %p41
        %p257 = pneg %p65
        %p258 = pneg %p62
        %p259 = pneg %p86
        %p260 = pneg %p83
        %p261 = pneg %p107
        %p262 = pneg %p104
        %p263 = pneg %p128
        %p264 = pneg %p125
        %p265 = pneg %p154
        %p266 = pneg %p151
        %s267 = sand.u32 %s141, 1
        %s268 = scalar_lea.sflag [#allocation4], %s267
        %s269 = sand.u32 %s141, 1
        %s270 = smul.addr %s269, 16
        %s271 = scalar_lea.vmem [#allocation8], %s270
        %s272 = smul.u32 2, %s23
        %s273 = smul.u32 2, %s23
        %v275 = vld [vmem:[%s237] sm:$0xf]
        %v276 = vld [vmem:[%s237 + $0x4] sm:$0xf]
        %v277 = vld [vmem:[#allocation5] sm:$0xf]
        %v278 = vld [vmem:[#allocation5 + $0x4] sm:$0xf]
        %v279 = vld [vmem:[#allocation5 + $0x8] sm:$0xf]
        %v280 = vld [vmem:[#allocation5 + $0xc] sm:$0xf]
        %v281 = vld [vmem:[%s2] sm:$0x1]
        %v283 = vlaneseq
        %v284 = vshrl.u32 %v283, 7
        %v285 = vsub.s32 0, %v284
        %v286 = vrot.slane %v281, %v285
        %v290 = vunpack.c.l.b16 %v275
        %v291 = vunpack.c.l.b16 %v276
        %v292 = vpack.c.b16 %v291, %v290
        %v297 = vunpack.c.l.b16 %v277
        %v298 = vunpack.c.l.b16 %v278
        %v299 = vunpack.c.l.b16 %v279
        %v300 = vunpack.c.l.b16 %v280
        %v301 = vpack.c.b16 %v298, %v297
        %v302 = vpack.c.b16 %v300, %v299
        %vm305 = vcmask 261120
        %v307 = vsel %vm305, %v292, 0
        %309 = vmatprep.subr.bf16.mxu0 0
        %310 = vmatpush1.bf16.msra.mxu0 0
        %311 = vmatprep.subr.bf16.mxu0 0
        %312 = vmatpush1.bf16.msra.mxu0 0
        %313 = vmatprep.subr.bf16.mxu0 0
        %314 = vmatpush1.bf16.msra.mxu0 0
        %315 = vmatprep.subr.bf16.mxu0 0
        %316 = vmatpush1.bf16.msra.mxu0 0
        %317 = vmatprep.subr.bf16.mxu0 0
        %318 = vmatpush1.bf16.msra.mxu0 0
        %319 = vmatprep.subr.bf16.mxu0 0
        %320 = vmatpush1.bf16.msra.mxu0 0
        %321 = vmatprep.subr.bf16.mxu0 0
        %322 = vmatpush1.bf16.msra.mxu0 %v302
        %323 = vmatprep.subr.bf16.mxu0 0
        %324 = vmatpush1.bf16.msra.mxu0 %v301
        %325 = vmatprep.subr.bf16.mxu0 0
        %326 = vmatpush2.bf16.msra.mxu0 0
        %327 = vmatprep.subr.bf16.mxu0 0
        %328 = vmatpush2.bf16.msra.mxu0 0
        %329 = vmatprep.subr.bf16.mxu0 0
        %330 = vmatpush2.bf16.msra.mxu0 0
        %331 = vmatprep.subr.bf16.mxu0 0
        %332 = vmatpush2.bf16.msra.mxu0 0
        %333 = vmatprep.subr.bf16.mxu0 0
        %334 = vmatpush2.bf16.msra.mxu0 0
        %335 = vmatprep.subr.bf16.mxu0 0
        %336 = vmatpush2.bf16.msra.mxu0 0
        %337 = vmatprep.subr.bf16.mxu0 0
        %338 = vmatpush2.bf16.msra.mxu0 0
        %339 = vmatprep.subr.bf16.mxu0 0
        %340 = vmatpush2.bf16.msra.mxu0 0
        %341 = vmatprep.mubr.bf16.mxu0 0
        %342 = vmatmul.mubr.bf16.gmra.mxu0 %v307
        %v343 = vpop.f32.mrf.mxu0
        %v344 = vadd.f32 %v286, %v343
        %v345 = vpop.f32.mrf.mxu0
        %v346 = vpop.f32.mrf.mxu0
        %v347 = vadd.f32 %v286, %v346
        %v348 = vpop.f32.mrf.mxu0
        %349 = vdwg.mxu0
        %v350 = vmax.f32 %v344, 0.0
        %v351 = vmax.f32 %v347, 0.0
        %v352 = vpack.c.bf16 %v351, %v350
        %v353 = vld [vmem:[#allocation7] sm:$0xf]
        %v354 = vld [vmem:[#allocation7 + $0x4] sm:$0xf]
        %v355 = vld [vmem:[#allocation7 + $0x8] sm:$0xf]
        %v356 = vld [vmem:[#allocation7 + $0xc] sm:$0xf]
        %v357 = vld [vmem:[#allocation7 + $0x10] sm:$0xf]
        %v358 = vld [vmem:[#allocation7 + $0x14] sm:$0xf]
        %v359 = vld [vmem:[#allocation7 + $0x18] sm:$0xf]
        %v360 = vld [vmem:[#allocation7 + $0x1c] sm:$0xf]
        %v361 = vld [vmem:[%s4] sm:$0x1]
        %v363 = vlaneseq
        %v364 = vshrl.u32 %v363, 7
        %v365 = vsub.s32 0, %v364
        %v366 = vrot.slane %v361, %v365
        %v376 = vunpack.c.l.b16 %v353
        %v377 = vunpack.c.l.b16 %v354
        %v378 = vunpack.c.l.b16 %v355
        %v379 = vunpack.c.l.b16 %v356
        %v380 = vunpack.c.l.b16 %v357
        %v381 = vunpack.c.l.b16 %v358
        %v382 = vunpack.c.l.b16 %v359
        %v383 = vunpack.c.l.b16 %v360
        %v384 = vpack.c.b16 %v377, %v376
        %v385 = vpack.c.b16 %v379, %v378
        %v386 = vpack.c.b16 %v381, %v380
        %v387 = vpack.c.b16 %v383, %v382
        %vm392 = vcmask 523264
        %v394 = vsel %vm392, %v352, 0
        %396 = vmatprep.subr.bf16.mxu0 0
        %397 = vmatpush1.bf16.msra.mxu0 0
        %398 = vmatprep.subr.bf16.mxu0 0
        %399 = vmatpush1.bf16.msra.mxu0 0
        %400 = vmatprep.subr.bf16.mxu0 0
        %401 = vmatpush1.bf16.msra.mxu0 0
        %402 = vmatprep.subr.bf16.mxu0 0
        %403 = vmatpush1.bf16.msra.mxu0 0
        %404 = vmatprep.subr.bf16.mxu0 0
        %405 = vmatpush1.bf16.msra.mxu0 %v387
        %406 = vmatprep.subr.bf16.mxu0 0
        %407 = vmatpush1.bf16.msra.mxu0 %v386
        %408 = vmatprep.subr.bf16.mxu0 0
        %409 = vmatpush1.bf16.msra.mxu0 %v385
        %410 = vmatprep.subr.bf16.mxu0 0
        %411 = vmatpush1.bf16.msra.mxu0 %v384
        %412 = vmatprep.subr.bf16.mxu0 0
        %413 = vmatpush2.bf16.msra.mxu0 0
        %414 = vmatprep.subr.bf16.mxu0 0
        %415 = vmatpush2.bf16.msra.mxu0 0
        %416 = vmatprep.subr.bf16.mxu0 0
        %417 = vmatpush2.bf16.msra.mxu0 0
        %418 = vmatprep.subr.bf16.mxu0 0
        %419 = vmatpush2.bf16.msra.mxu0 0
        %420 = vmatprep.subr.bf16.mxu0 0
        %421 = vmatpush2.bf16.msra.mxu0 0
        %422 = vmatprep.subr.bf16.mxu0 0
        %423 = vmatpush2.bf16.msra.mxu0 0
        %424 = vmatprep.subr.bf16.mxu0 0
        %425 = vmatpush2.bf16.msra.mxu0 0
        %426 = vmatprep.subr.bf16.mxu0 0
        %427 = vmatpush2.bf16.msra.mxu0 0
        %428 = vmatprep.mubr.bf16.mxu0 0
        %429 = vmatmul.mubr.bf16.gmra.mxu0 %v394
        %v430 = vpop.f32.mrf.mxu0
        %v431 = vadd.f32 %v366, %v430
        %v432 = vpop.f32.mrf.mxu0
        %v433 = vpop.f32.mrf.mxu0
        %v434 = vadd.f32 %v366, %v433
        %v435 = vpop.f32.mrf.mxu0
        %436 = vdwg.mxu0
        %v437 = vmax.f32 %v431, 0.0
        %v438 = vmax.f32 %v434, 0.0
        %439 = vst [vmem:[%s271] sm:$0xff] %v437
        %440 = vst [vmem:[%s271 + $0x8] sm:$0xff] %v438
        %s441 = sand.u32 %s141, 1
        %s442 = scalar_lea.sflag [#allocation4], %s441
        %s443 = sand.u32 %s141, 1
        %s444 = smul.addr %s443, 16
        %s445 = scalar_lea.vmem [#allocation8], %s444
        // Predicated region
        $region53: #{tpu_custom_call.1} parent=39 // pred_check
          %p446 = pneg %p151
        $region54: #{tpu_custom_call.1} parent=39 // pred_check_branch
          %448 = sbr.rel (%p446) target = $region56
        $region55: #{tpu_custom_call.1} parent=39 // pred_region
          %s449 = smul.u32 2, %s23
          %s451 = ssub.s32 256, 256
          %452 = vsyncadd %s442, %s451
          %s453 = smul.addr %s449, 128
          %s454 = scalar_lea.hbm %s5, %s453
          %s455 = sshll.u32 %s445, 4
          %s456 = int_to_ptr.vmem [resolvable:$true] %s455
          %461 = dma.vmem_to_hbm [thread:$0]  %s456, 256, %s454, %s442, 128, 128, 8
        $region56: #{tpu_custom_call.1} parent=39 // pred_fallthru
          _
      $region40: #{tpu_custom_call.1} parent=5 // pred_fallthru
        _
      %p462 = scmp.le.s32.totalorder 2, %s18
      // Predicated region
      $region57: #{tpu_custom_call.1} parent=5 // pred_check
        %p463 = pneg %p462
      $region58: #{tpu_custom_call.1} parent=5 // pred_check_branch
        %465 = sbr.rel (%p463) target = $region60
      $region59: #{tpu_custom_call.1} parent=5 // pred_region
        %s466 = ssub.s32 %s18, 2
        // Predicated region
        $region61: #{tpu_custom_call.1} parent=59 // pred_check
          %p467 = pneg %p157
        $region62: #{tpu_custom_call.1} parent=59 // pred_check_branch
          %469 = sbr.rel (%p467) target = $region64
        $region63: #{tpu_custom_call.1} parent=59 // pred_region
          %s470 = sand.u32 %s142, 1
          %s471 = scalar_lea.sflag [#allocation4], %s470
          %s472 = sand.u32 %s142, 1
          %s473 = smul.addr %s472, 16
          %s474 = scalar_lea.vmem [#allocation8], %s473
          %475 = dma.done %s471, 256
        $region64: #{tpu_custom_call.1} parent=59 // pred_fallthru
          _
      $region60: #{tpu_custom_call.1} parent=5 // pred_fallthru
        _
    $region6: #{tpu_custom_call.1} parent=1 // loop_footer
      %s22 = sadd.s32 1, %s18
    $region7: #{tpu_custom_call.1} parent=1 // loop_footer_branch
      %17 = sbr.rel target = $region3
    $region8: #{tpu_custom_call.1} parent=1 // loop_exit
      _
    %476 = vsyncpa [#allocation3], 1
    %s477 = scalar_lea.sflag [#allocation3], 1
    %478 = vsyncpa %s477, 1
    %479 = vsyncpa [#allocation6], 1
    %480 = vsyncpa [#allocation4], 1
    %s481 = scalar_lea.sflag [#allocation4], 1
    %482 = vsyncpa %s481, 1

</llo_original>
